<compile_context>
chip_gen: v7x
topology: tpu7x:2x2x1
jax: 0.10.0
libtpu: 0.0.40
codegen_flags: <defaults>
</compile_context>

<pallas_src>
import functools
import math

import jax
import jax.numpy as jnp
from jax.experimental import pallas as pl
from jax.experimental.pallas import tpu as pltpu

LANE = 128     # TPU lane width: feature dims are padded to this
SUBLANE = 8    # f32 sublane count: batch is padded to a multiple of this


def _round_up(n, m):
    return ((n + m - 1) // m) * m


# ----------------------------------------------------------------------------
# Fused MLP kernel: x -> sigmoid(x @ W_l + b_l) for l = 0..L-1, all in VMEM.
# ----------------------------------------------------------------------------
def _mlp_fused_kernel(x_ref, w_ref, b_ref, o_ref, *, num_layers):
    # x_ref : (Bp, LANE)            padded activations
    # w_ref : (L, LANE, LANE)       padded, stacked weights (f_in x f_out)
    # b_ref : (L, 1, LANE)          padded, stacked biases
    # o_ref : (Bp, LANE)            padded output of the last layer
    a = x_ref[...]
    for l in range(num_layers):            # static unroll: acts stay in vregs
        y = jnp.dot(a, w_ref[l], preferred_element_type=jnp.float32)
        y = y + b_ref[l]                   # (Bp, LANE) + (1, LANE) broadcast
        a = jax.nn.sigmoid(y)              # EUP exp + VPU; f32 throughout
    o_ref[...] = a.astype(o_ref.dtype)


# ----------------------------------------------------------------------------
# Parameter packing: zero-pad each layer to (LANE, LANE) / (1, LANE) and stack.
# Zero padding guarantees padded lanes contribute nothing to the next layer.
# ----------------------------------------------------------------------------
def pack_params(params, dtype=jnp.float32):
    num_layers = len(params)
    w_stack = jnp.zeros((num_layers, LANE, LANE), dtype)
    b_stack = jnp.zeros((num_layers, 1, LANE), dtype)
    for l, (w, b) in enumerate(params):
        f_in, f_out = w.shape
        # TODO(synk): tile the layer loop if feature dims ever exceed 128.
        assert f_in <= LANE and f_out <= LANE
        w_stack = w_stack.at[l, :f_in, :f_out].set(w.astype(dtype))
        b_stack = b_stack.at[l, :1, :f_out].set(b.astype(dtype))
    return w_stack, b_stack


def nu2_forward(params, x):
    """Forward pass of nu_2: (Linear+Sigmoid) * (n_layers + 1), fused."""
    num_layers = len(params)
    n_output = params[-1][0].shape[1]
    w_stack, b_stack = pack_params(params)

    batch, f_in = x.shape
    bp = _round_up(max(batch, SUBLANE), SUBLANE)
    x_pad = jnp.zeros((bp, LANE), jnp.float32).at[:batch, :f_in].set(
        x.astype(jnp.float32))

    out_pad = pl.pallas_call(
        functools.partial(_mlp_fused_kernel, num_layers=num_layers),
        out_shape=jax.ShapeDtypeStruct((bp, LANE), jnp.float32),
        in_specs=[
            pl.BlockSpec(memory_space=pltpu.MemorySpace.VMEM),
            pl.BlockSpec(memory_space=pltpu.MemorySpace.VMEM),
            pl.BlockSpec(memory_space=pltpu.MemorySpace.VMEM),
        ],
        out_specs=pl.BlockSpec(memory_space=pltpu.MemorySpace.VMEM),
    )(x_pad, w_stack, b_stack)

    return out_pad[:batch, :n_output].astype(x.dtype)


# ----------------------------------------------------------------------------
# Deterministic init mimicking nn.Linear (uniform +/- 1/sqrt(fan_in)).
# Weight layout is (fan_in, fan_out), i.e. transposed vs. PyTorch's (out, in).
# ----------------------------------------------------------------------------
def init_linear(key, fan_in, fan_out, dtype=jnp.float32):
    kw, kb = jax.random.split(key)
    bound = 1.0 / math.sqrt(fan_in)
    w = jax.random.uniform(kw, (fan_in, fan_out), dtype, -bound, bound)
    b = jax.random.uniform(kb, (1, fan_out), dtype, -bound, bound)
    return w, b


def make_nu2_params(key, n_input, n_output, n_hidden, n_layers):
    keys = jax.random.split(key, n_layers + 1)
    params = [init_linear(keys[0], n_input, n_hidden)]            # fcs
    for i in range(n_layers - 1):                                 # fch
        params.append(init_linear(keys[1 + i], n_hidden, n_hidden))
    params.append(init_linear(keys[n_layers], n_hidden, n_output))  # fce
    return params


if __name__ == "__main__":
    # Small shapes consistent with the module: batch of 8 samples,
    # N_INPUT=4, N_HIDDEN=32, N_OUTPUT=2, N_LAYERS=3 (=> 4 Linear+Sigmoid).
    N_INPUT, N_OUTPUT, N_HIDDEN, N_LAYERS = 4, 2, 32, 3
    BATCH = 8

    key = jax.random.PRNGKey(0)
    kx, kp = jax.random.split(key)
    x = jax.random.normal(kx, (BATCH, N_INPUT), dtype=jnp.float32)
    params = make_nu2_params(kp, N_INPUT, N_OUTPUT, N_HIDDEN, N_LAYERS)

    fwd = jax.jit(nu2_forward)
    out = fwd(params, x)
    out = jax.block_until_ready(out)

    # Sanity check against a pure-JAX reference of the same math.
    ref = x
    for w, b in params:
        ref = jax.nn.sigmoid(ref @ w + b)
    assert out.shape == (BATCH, N_OUTPUT)
    assert jnp.allclose(out, ref, atol=1e-5, rtol=1e-5)

    print("KERNEL_OK")
</pallas_src>

<mosaic_0001>
module attributes {stable_mosaic.version = 11 : i64} {
  func.func @_mlp_fused_kernel(%arg0: memref<8x128xf32, #tpu.memory_space<vmem>>, %arg1: memref<4x128x128xf32, #tpu.memory_space<vmem>>, %arg2: memref<4x1x128xf32, #tpu.memory_space<vmem>>, %arg3: memref<8x128xf32, #tpu.memory_space<vmem>>) attributes {dimension_semantics = [], scalar_prefetch = 0 : i64, scratch_operands = 0 : i64, tpu.core_type = #tpu.core_type<tc>} {
    %c0 = arith.constant 0 : index
    %c0_0 = arith.constant 0 : index
    %0 = vector.load %arg0[%c0, %c0_0] : memref<8x128xf32, #tpu.memory_space<vmem>>, vector<8x128xf32>
    %c0_1 = arith.constant 0 : index
    %c0_2 = arith.constant 0 : index
    %c0_3 = arith.constant 0 : index
    %1 = vector.load %arg1[%c0_1, %c0_2, %c0_3] : memref<4x128x128xf32, #tpu.memory_space<vmem>>, vector<1x128x128xf32>
    %2 = vector.shape_cast %1 : vector<1x128x128xf32> to vector<128x128xf32>
    %cst = arith.constant dense<0.000000e+00> : vector<8x128xf32>
    %3 = tpu.matmul %0, %2, %cst {dimension_numbers = #tpu.dot_dimension_numbers<[1], [0], [0], [1], [0, 0, 1, 1], [], []>} : vector<8x128xf32>, vector<128x128xf32>, vector<8x128xf32> -> vector<8x128xf32>
    %c0_4 = arith.constant 0 : index
    %c0_5 = arith.constant 0 : index
    %c0_6 = arith.constant 0 : index
    %4 = vector.load %arg2[%c0_4, %c0_5, %c0_6] : memref<4x1x128xf32, #tpu.memory_space<vmem>>, vector<1x1x128xf32>
    %5 = vector.shape_cast %4 : vector<1x1x128xf32> to vector<1x128xf32>
    %6 = vector.broadcast %5 : vector<1x128xf32> to vector<8x128xf32>
    %7 = arith.addf %3, %6 : vector<8x128xf32>
    %8 = arith.negf %7 : vector<8x128xf32>
    %9 = math.exp %8 : vector<8x128xf32>
    %cst_7 = arith.constant 1.000000e+00 : f32
    %10 = vector.broadcast %cst_7 : f32 to vector<8x128xf32>
    %11 = arith.addf %10, %9 : vector<8x128xf32>
    %12 = arith.divf %10, %11 : vector<8x128xf32>
    %c1 = arith.constant 1 : index
    %c0_8 = arith.constant 0 : index
    %c0_9 = arith.constant 0 : index
    %13 = vector.load %arg1[%c1, %c0_8, %c0_9] : memref<4x128x128xf32, #tpu.memory_space<vmem>>, vector<1x128x128xf32>
    %14 = vector.shape_cast %13 : vector<1x128x128xf32> to vector<128x128xf32>
    %cst_10 = arith.constant dense<0.000000e+00> : vector<8x128xf32>
    %15 = tpu.matmul %12, %14, %cst_10 {dimension_numbers = #tpu.dot_dimension_numbers<[1], [0], [0], [1], [0, 0, 1, 1], [], []>} : vector<8x128xf32>, vector<128x128xf32>, vector<8x128xf32> -> vector<8x128xf32>
    %c1_11 = arith.constant 1 : index
    %c0_12 = arith.constant 0 : index
    %c0_13 = arith.constant 0 : index
    %16 = vector.load %arg2[%c1_11, %c0_12, %c0_13] : memref<4x1x128xf32, #tpu.memory_space<vmem>>, vector<1x1x128xf32>
    %17 = vector.shape_cast %16 : vector<1x1x128xf32> to vector<1x128xf32>
    %18 = vector.broadcast %17 : vector<1x128xf32> to vector<8x128xf32>
    %19 = arith.addf %15, %18 : vector<8x128xf32>
    %20 = arith.negf %19 : vector<8x128xf32>
    %21 = math.exp %20 : vector<8x128xf32>
    %cst_14 = arith.constant 1.000000e+00 : f32
    %22 = vector.broadcast %cst_14 : f32 to vector<8x128xf32>
    %23 = arith.addf %22, %21 : vector<8x128xf32>
    %24 = arith.divf %22, %23 : vector<8x128xf32>
    %c2 = arith.constant 2 : index
    %c0_15 = arith.constant 0 : index
    %c0_16 = arith.constant 0 : index
    %25 = vector.load %arg1[%c2, %c0_15, %c0_16] : memref<4x128x128xf32, #tpu.memory_space<vmem>>, vector<1x128x128xf32>
    %26 = vector.shape_cast %25 : vector<1x128x128xf32> to vector<128x128xf32>
    %cst_17 = arith.constant dense<0.000000e+00> : vector<8x128xf32>
    %27 = tpu.matmul %24, %26, %cst_17 {dimension_numbers = #tpu.dot_dimension_numbers<[1], [0], [0], [1], [0, 0, 1, 1], [], []>} : vector<8x128xf32>, vector<128x128xf32>, vector<8x128xf32> -> vector<8x128xf32>
    %c2_18 = arith.constant 2 : index
    %c0_19 = arith.constant 0 : index
    %c0_20 = arith.constant 0 : index
    %28 = vector.load %arg2[%c2_18, %c0_19, %c0_20] : memref<4x1x128xf32, #tpu.memory_space<vmem>>, vector<1x1x128xf32>
    %29 = vector.shape_cast %28 : vector<1x1x128xf32> to vector<1x128xf32>
    %30 = vector.broadcast %29 : vector<1x128xf32> to vector<8x128xf32>
    %31 = arith.addf %27, %30 : vector<8x128xf32>
    %32 = arith.negf %31 : vector<8x128xf32>
    %33 = math.exp %32 : vector<8x128xf32>
    %cst_21 = arith.constant 1.000000e+00 : f32
    %34 = vector.broadcast %cst_21 : f32 to vector<8x128xf32>
    %35 = arith.addf %34, %33 : vector<8x128xf32>
    %36 = arith.divf %34, %35 : vector<8x128xf32>
    %c3 = arith.constant 3 : index
    %c0_22 = arith.constant 0 : index
    %c0_23 = arith.constant 0 : index
    %37 = vector.load %arg1[%c3, %c0_22, %c0_23] : memref<4x128x128xf32, #tpu.memory_space<vmem>>, vector<1x128x128xf32>
    %38 = vector.shape_cast %37 : vector<1x128x128xf32> to vector<128x128xf32>
    %cst_24 = arith.constant dense<0.000000e+00> : vector<8x128xf32>
    %39 = tpu.matmul %36, %38, %cst_24 {dimension_numbers = #tpu.dot_dimension_numbers<[1], [0], [0], [1], [0, 0, 1, 1], [], []>} : vector<8x128xf32>, vector<128x128xf32>, vector<8x128xf32> -> vector<8x128xf32>
    %c3_25 = arith.constant 3 : index
    %c0_26 = arith.constant 0 : index
    %c0_27 = arith.constant 0 : index
    %40 = vector.load %arg2[%c3_25, %c0_26, %c0_27] : memref<4x1x128xf32, #tpu.memory_space<vmem>>, vector<1x1x128xf32>
    %41 = vector.shape_cast %40 : vector<1x1x128xf32> to vector<1x128xf32>
    %42 = vector.broadcast %41 : vector<1x128xf32> to vector<8x128xf32>
    %43 = arith.addf %39, %42 : vector<8x128xf32>
    %44 = arith.negf %43 : vector<8x128xf32>
    %45 = math.exp %44 : vector<8x128xf32>
    %cst_28 = arith.constant 1.000000e+00 : f32
    %46 = vector.broadcast %cst_28 : f32 to vector<8x128xf32>
    %47 = arith.addf %46, %45 : vector<8x128xf32>
    %48 = arith.divf %46, %47 : vector<8x128xf32>
    %c0_29 = arith.constant 0 : index
    %c0_30 = arith.constant 0 : index
    %49 = vector.load %arg3[%c0_29, %c0_30] : memref<8x128xf32, #tpu.memory_space<vmem>>, vector<8x128xf32>
    tpu.vector_store %arg3[%c0_29, %c0_30], %48 {strides = array<i32>} : memref<8x128xf32, #tpu.memory_space<vmem>>, vector<8x128xf32>,
    return
  }
}

</mosaic_0001>

<llo_original>
// kernel: nu2_forward.1
$region0: #{nu2_forward.1}
  #allocation0 [shape = 'u32[]', space=smem, size = 0x4, offset = 0x4, fixed_abs, tag = 'smem constant byte address 0x4 - core index']
  #allocation1 [shape = 'u32[144,128]{1,0:T(1,128)}', space=vmem, size = 0x12000, scoped, tag = 'internal scratch']
  %s0 = inlined_call_operand.vmem [shape: f32[8,128], index: 0, kind: input, shape index: {}]
  %s1 = inlined_call_operand.vmem [shape: f32[4,128,128], index: 1, kind: input, shape index: {}]
  %s2 = inlined_call_operand.vmem [shape: f32[4,1,128], index: 2, kind: input, shape index: {}]
  %s3 = inlined_call_operand.vmem [shape: f32[8,128], index: 3, kind: output, shape index: {}]
  %s4 = sld [smem:[#allocation0]]
  $region22: #{nu2_forward.1} parent=0
    _
  %s6 = ssub.s32 1, %s4
  %s7 = scalar_select 0, %s6, %s4
  // Predicated region
  $region2: #{nu2_forward.1} parent=0 // pred_check
    _
  $region3: #{nu2_forward.1} parent=0 // pred_check_branch
    %9 = sbr.rel (0) target = $region5
  $region4: #{nu2_forward.1} parent=0 // pred_region
    _
  $region5: #{nu2_forward.1} parent=0 // pred_fallthru
    _
  // Predicated region
  $region6: #{nu2_forward.1} parent=0 // pred_check
    _
  $region7: #{nu2_forward.1} parent=0 // pred_check_branch
    %11 = sbr.rel (0) target = $region9
  $region8: #{nu2_forward.1} parent=0 // pred_region
    _
  $region9: #{nu2_forward.1} parent=0 // pred_fallthru
    _
  // Predicated region
  $region10: #{nu2_forward.1} parent=0 // pred_check
    _
  $region11: #{nu2_forward.1} parent=0 // pred_check_branch
    %13 = sbr.rel (0) target = $region13
  $region12: #{nu2_forward.1} parent=0 // pred_region
    _
  $region13: #{nu2_forward.1} parent=0 // pred_fallthru
    _
  %v14 = vld [vmem:[%s0] sm:$0xff]
  %v15 = vld [vmem:[%s1] sm:$0xff]
  %v16 = vld [vmem:[%s1 + $0x8] sm:$0xff]
  %v17 = vld [vmem:[%s1 + $0x10] sm:$0xff]
  %v18 = vld [vmem:[%s1 + $0x18] sm:$0xff]
  %v19 = vld [vmem:[%s1 + $0x20] sm:$0xff]
  %v20 = vld [vmem:[%s1 + $0x28] sm:$0xff]
  %v21 = vld [vmem:[%s1 + $0x30] sm:$0xff]
  %v22 = vld [vmem:[%s1 + $0x38] sm:$0xff]
  %v23 = vld [vmem:[%s1 + $0x40] sm:$0xff]
  %v24 = vld [vmem:[%s1 + $0x48] sm:$0xff]
  %v25 = vld [vmem:[%s1 + $0x50] sm:$0xff]
  %v26 = vld [vmem:[%s1 + $0x58] sm:$0xff]
  %v27 = vld [vmem:[%s1 + $0x60] sm:$0xff]
  %v28 = vld [vmem:[%s1 + $0x68] sm:$0xff]
  %v29 = vld [vmem:[%s1 + $0x70] sm:$0xff]
  %v30 = vld [vmem:[%s1 + $0x78] sm:$0xff]
  %v31 = vld [vmem:[%s2] sm:$0x1]
  %v33 = vlaneseq
  %v34 = vshrl.u32 %v33, 7
  %v35 = vsub.s32 0, %v34
  %v36 = vrot.slane %v31, %v35
  %38 = vmatprep.subr.mxu0 0.0
  %39 = vmatpush1.msra.mxu0 %v15
  %40 = vmatprep.subr.mxu0 0.0
  %41 = vmatpush1.msra.mxu0 %v16
  %42 = vmatprep.subr.mxu0 0.0
  %43 = vmatpush1.msra.mxu0 %v17
  %44 = vmatprep.subr.mxu0 0.0
  %45 = vmatpush1.msra.mxu0 %v18
  %46 = vmatprep.subr.mxu0 0.0
  %47 = vmatpush1.msra.mxu0 %v19
  %48 = vmatprep.subr.mxu0 0.0
  %49 = vmatpush1.msra.mxu0 %v20
  %50 = vmatprep.subr.mxu0 0.0
  %51 = vmatpush1.msra.mxu0 %v21
  %52 = vmatprep.subr.mxu0 0.0
  %53 = vmatpush1.msra.mxu0 %v22
  %54 = vmatprep.subr.mxu0 0.0
  %55 = vmatpush1.msra.mxu0 %v23
  %56 = vmatprep.subr.mxu0 0.0
  %57 = vmatpush1.msra.mxu0 %v24
  %58 = vmatprep.subr.mxu0 0.0
  %59 = vmatpush1.msra.mxu0 %v25
  %60 = vmatprep.subr.mxu0 0.0
  %61 = vmatpush1.msra.mxu0 %v26
  %62 = vmatprep.subr.mxu0 0.0
  %63 = vmatpush1.msra.mxu0 %v27
  %64 = vmatprep.subr.mxu0 0.0
  %65 = vmatpush1.msra.mxu0 %v28
  %66 = vmatprep.subr.mxu0 0.0
  %67 = vmatpush1.msra.mxu0 %v29
  %68 = vmatprep.subr.mxu0 0.0
  %69 = vmatpush1.msra.mxu0 %v30
  %70 = vmatprep.subr.mxu0 0.0
  %71 = vmatpush1.msra.mxu0 0.0
  %72 = vmatprep.subr.mxu0 0.0
  %73 = vmatpush1.msra.mxu0 0.0
  %74 = vmatprep.subr.mxu0 0.0
  %75 = vmatpush1.msra.mxu0 0.0
  %76 = vmatprep.subr.mxu0 0.0
  %77 = vmatpush1.msra.mxu0 0.0
  %78 = vmatprep.subr.mxu0 0.0
  %79 = vmatpush1.msra.mxu0 0.0
  %80 = vmatprep.subr.mxu0 0.0
  %81 = vmatpush1.msra.mxu0 0.0
  %82 = vmatprep.subr.mxu0 0.0
  %83 = vmatpush1.msra.mxu0 0.0
  %84 = vmatprep.subr.mxu0 0.0
  %85 = vmatpush1.msra.mxu0 0.0
  %86 = vmatprep.subr.mxu0 0.0
  %87 = vmatpush1.msra.mxu0 0.0
  %88 = vmatprep.subr.mxu0 0.0
  %89 = vmatpush1.msra.mxu0 0.0
  %90 = vmatprep.subr.mxu0 0.0
  %91 = vmatpush1.msra.mxu0 0.0
  %92 = vmatprep.subr.mxu0 0.0
  %93 = vmatpush1.msra.mxu0 0.0
  %94 = vmatprep.subr.mxu0 0.0
  %95 = vmatpush1.msra.mxu0 0.0
  %96 = vmatprep.subr.mxu0 0.0
  %97 = vmatpush1.msra.mxu0 0.0
  %98 = vmatprep.subr.mxu0 0.0
  %99 = vmatpush1.msra.mxu0 0.0
  %100 = vmatprep.subr.mxu0 0.0
  %101 = vmatpush1.msra.mxu0 0.0
  %102 = vmatprep.mubr.f32.mxu0 0.0
  %103 = vmatmul.mubr.f32.gmra.mrb[0].mxu0 %v14
  %v104 = vpop.f32.mrb[0].mxu0
  %v105 = vadd.f32 %v36, %v104
  %v106 = vpop.f32.mrb[0].mxu0
  %107 = vdwg.mxu0
  %v108 = vxor.u32 %v105, 2147483648
  %v109 = vmul.f32 %v108, 1.442695
  %v110 = vpow.pop %v109
  %v111 = vadd.f32 %v110, 1.0
  %v112 = vrcp.pop %v111
  %v113 = vmul.f32 1.0, %v112
  %s114 = scalar_lea.vmem %s1, 128
  %v115 = vld [vmem:[%s114] sm:$0xff]
  %v116 = vld [vmem:[%s114 + $0x8] sm:$0xff]
  %v117 = vld [vmem:[%s114 + $0x10] sm:$0xff]
  %v118 = vld [vmem:[%s114 + $0x18] sm:$0xff]
  %v119 = vld [vmem:[%s114 + $0x20] sm:$0xff]
  %v120 = vld [vmem:[%s114 + $0x28] sm:$0xff]
  %v121 = vld [vmem:[%s114 + $0x30] sm:$0xff]
  %v122 = vld [vmem:[%s114 + $0x38] sm:$0xff]
  %v123 = vld [vmem:[%s114 + $0x40] sm:$0xff]
  %v124 = vld [vmem:[%s114 + $0x48] sm:$0xff]
  %v125 = vld [vmem:[%s114 + $0x50] sm:$0xff]
  %v126 = vld [vmem:[%s114 + $0x58] sm:$0xff]
  %v127 = vld [vmem:[%s114 + $0x60] sm:$0xff]
  %v128 = vld [vmem:[%s114 + $0x68] sm:$0xff]
  %v129 = vld [vmem:[%s114 + $0x70] sm:$0xff]
  %v130 = vld [vmem:[%s114 + $0x78] sm:$0xff]
  %s131 = scalar_lea.vmem %s2, 1
  %v132 = vld [vmem:[%s131] sm:$0x1]
  %v134 = vlaneseq
  %v135 = vshrl.u32 %v134, 7
  %v136 = vsub.s32 0, %v135
  %v137 = vrot.slane %v132, %v136
  %139 = vmatprep.subr.mxu0 0.0
  %140 = vmatpush1.msra.mxu0 %v115
  %141 = vmatprep.subr.mxu0 0.0
  %142 = vmatpush1.msra.mxu0 %v116
  %143 = vmatprep.subr.mxu0 0.0
  %144 = vmatpush1.msra.mxu0 %v117
  %145 = vmatprep.subr.mxu0 0.0
  %146 = vmatpush1.msra.mxu0 %v118
  %147 = vmatprep.subr.mxu0 0.0
  %148 = vmatpush1.msra.mxu0 %v119
  %149 = vmatprep.subr.mxu0 0.0
  %150 = vmatpush1.msra.mxu0 %v120
  %151 = vmatprep.subr.mxu0 0.0
  %152 = vmatpush1.msra.mxu0 %v121
  %153 = vmatprep.subr.mxu0 0.0
  %154 = vmatpush1.msra.mxu0 %v122
  %155 = vmatprep.subr.mxu0 0.0
  %156 = vmatpush1.msra.mxu0 %v123
  %157 = vmatprep.subr.mxu0 0.0
  %158 = vmatpush1.msra.mxu0 %v124
  %159 = vmatprep.subr.mxu0 0.0
  %160 = vmatpush1.msra.mxu0 %v125
  %161 = vmatprep.subr.mxu0 0.0
  %162 = vmatpush1.msra.mxu0 %v126
  %163 = vmatprep.subr.mxu0 0.0
  %164 = vmatpush1.msra.mxu0 %v127
  %165 = vmatprep.subr.mxu0 0.0
  %166 = vmatpush1.msra.mxu0 %v128
  %167 = vmatprep.subr.mxu0 0.0
  %168 = vmatpush1.msra.mxu0 %v129
  %169 = vmatprep.subr.mxu0 0.0
  %170 = vmatpush1.msra.mxu0 %v130
  %171 = vmatprep.subr.mxu0 0.0
  %172 = vmatpush1.msra.mxu0 0.0
  %173 = vmatprep.subr.mxu0 0.0
  %174 = vmatpush1.msra.mxu0 0.0
  %175 = vmatprep.subr.mxu0 0.0
  %176 = vmatpush1.msra.mxu0 0.0
  %177 = vmatprep.subr.mxu0 0.0
  %178 = vmatpush1.msra.mxu0 0.0
  %179 = vmatprep.subr.mxu0 0.0
  %180 = vmatpush1.msra.mxu0 0.0
  %181 = vmatprep.subr.mxu0 0.0
  %182 = vmatpush1.msra.mxu0 0.0
  %183 = vmatprep.subr.mxu0 0.0
  %184 = vmatpush1.msra.mxu0 0.0
  %185 = vmatprep.subr.mxu0 0.0
  %186 = vmatpush1.msra.mxu0 0.0
  %187 = vmatprep.subr.mxu0 0.0
  %188 = vmatpush1.msra.mxu0 0.0
  %189 = vmatprep.subr.mxu0 0.0
  %190 = vmatpush1.msra.mxu0 0.0
  %191 = vmatprep.subr.mxu0 0.0
  %192 = vmatpush1.msra.mxu0 0.0
  %193 = vmatprep.subr.mxu0 0.0
  %194 = vmatpush1.msra.mxu0 0.0
  %195 = vmatprep.subr.mxu0 0.0
  %196 = vmatpush1.msra.mxu0 0.0
  %197 = vmatprep.subr.mxu0 0.0
  %198 = vmatpush1.msra.mxu0 0.0
  %199 = vmatprep.subr.mxu0 0.0
  %200 = vmatpush1.msra.mxu0 0.0
  %201 = vmatprep.subr.mxu0 0.0
  %202 = vmatpush1.msra.mxu0 0.0
  %203 = vmatprep.mubr.f32.mxu0 0.0
  %204 = vmatmul.mubr.f32.gmra.mrb[0].mxu0 %v113
  %v205 = vpop.f32.mrb[0].mxu0
  %v206 = vadd.f32 %v137, %v205
  %v207 = vpop.f32.mrb[0].mxu0
  %208 = vdwg.mxu0
  %v209 = vxor.u32 %v206, 2147483648
  %v210 = vmul.f32 %v209, 1.442695
  %v211 = vpow.pop %v210
  %v212 = vadd.f32 %v211, 1.0
  %v213 = vrcp.pop %v212
  %v214 = vmul.f32 1.0, %v213
  %s215 = scalar_lea.vmem %s1, 256
  %v216 = vld [vmem:[%s215] sm:$0xff]
  %v217 = vld [vmem:[%s215 + $0x8] sm:$0xff]
  %v218 = vld [vmem:[%s215 + $0x10] sm:$0xff]
  %v219 = vld [vmem:[%s215 + $0x18] sm:$0xff]
  %v220 = vld [vmem:[%s215 + $0x20] sm:$0xff]
  %v221 = vld [vmem:[%s215 + $0x28] sm:$0xff]
  %v222 = vld [vmem:[%s215 + $0x30] sm:$0xff]
  %v223 = vld [vmem:[%s215 + $0x38] sm:$0xff]
  %v224 = vld [vmem:[%s215 + $0x40] sm:$0xff]
  %v225 = vld [vmem:[%s215 + $0x48] sm:$0xff]
  %v226 = vld [vmem:[%s215 + $0x50] sm:$0xff]
  %v227 = vld [vmem:[%s215 + $0x58] sm:$0xff]
  %v228 = vld [vmem:[%s215 + $0x60] sm:$0xff]
  %v229 = vld [vmem:[%s215 + $0x68] sm:$0xff]
  %v230 = vld [vmem:[%s215 + $0x70] sm:$0xff]
  %v231 = vld [vmem:[%s215 + $0x78] sm:$0xff]
  %s232 = scalar_lea.vmem %s2, 2
  %v233 = vld [vmem:[%s232] sm:$0x1]
  %v235 = vlaneseq
  %v236 = vshrl.u32 %v235, 7
  %v237 = vsub.s32 0, %v236
  %v238 = vrot.slane %v233, %v237
  %240 = vmatprep.subr.mxu0 0.0
  %241 = vmatpush1.msra.mxu0 %v216
  %242 = vmatprep.subr.mxu0 0.0
  %243 = vmatpush1.msra.mxu0 %v217
  %244 = vmatprep.subr.mxu0 0.0
  %245 = vmatpush1.msra.mxu0 %v218
  %246 = vmatprep.subr.mxu0 0.0
  %247 = vmatpush1.msra.mxu0 %v219
  %248 = vmatprep.subr.mxu0 0.0
  %249 = vmatpush1.msra.mxu0 %v220
  %250 = vmatprep.subr.mxu0 0.0
  %251 = vmatpush1.msra.mxu0 %v221
  %252 = vmatprep.subr.mxu0 0.0
  %253 = vmatpush1.msra.mxu0 %v222
  %254 = vmatprep.subr.mxu0 0.0
  %255 = vmatpush1.msra.mxu0 %v223
  %256 = vmatprep.subr.mxu0 0.0
  %257 = vmatpush1.msra.mxu0 %v224
  %258 = vmatprep.subr.mxu0 0.0
  %259 = vmatpush1.msra.mxu0 %v225
  %260 = vmatprep.subr.mxu0 0.0
  %261 = vmatpush1.msra.mxu0 %v226
  %262 = vmatprep.subr.mxu0 0.0
  %263 = vmatpush1.msra.mxu0 %v227
  %264 = vmatprep.subr.mxu0 0.0
  %265 = vmatpush1.msra.mxu0 %v228
  %266 = vmatprep.subr.mxu0 0.0
  %267 = vmatpush1.msra.mxu0 %v229
  %268 = vmatprep.subr.mxu0 0.0
  %269 = vmatpush1.msra.mxu0 %v230
  %270 = vmatprep.subr.mxu0 0.0
  %271 = vmatpush1.msra.mxu0 %v231
  %272 = vmatprep.subr.mxu0 0.0
  %273 = vmatpush1.msra.mxu0 0.0
  %274 = vmatprep.subr.mxu0 0.0
  %275 = vmatpush1.msra.mxu0 0.0
  %276 = vmatprep.subr.mxu0 0.0
  %277 = vmatpush1.msra.mxu0 0.0
  %278 = vmatprep.subr.mxu0 0.0
  %279 = vmatpush1.msra.mxu0 0.0
  %280 = vmatprep.subr.mxu0 0.0
  %281 = vmatpush1.msra.mxu0 0.0
  %282 = vmatprep.subr.mxu0 0.0
  %283 = vmatpush1.msra.mxu0 0.0
  %284 = vmatprep.subr.mxu0 0.0
  %285 = vmatpush1.msra.mxu0 0.0
  %286 = vmatprep.subr.mxu0 0.0
  %287 = vmatpush1.msra.mxu0 0.0
  %288 = vmatprep.subr.mxu0 0.0
  %289 = vmatpush1.msra.mxu0 0.0
  %290 = vmatprep.subr.mxu0 0.0
  %291 = vmatpush1.msra.mxu0 0.0
  %292 = vmatprep.subr.mxu0 0.0
  %293 = vmatpush1.msra.mxu0 0.0
  %294 = vmatprep.subr.mxu0 0.0
  %295 = vmatpush1.msra.mxu0 0.0
  %296 = vmatprep.subr.mxu0 0.0
  %297 = vmatpush1.msra.mxu0 0.0
  %298 = vmatprep.subr.mxu0 0.0
  %299 = vmatpush1.msra.mxu0 0.0
  %300 = vmatprep.subr.mxu0 0.0
  %301 = vmatpush1.msra.mxu0 0.0
  %302 = vmatprep.subr.mxu0 0.0
  %303 = vmatpush1.msra.mxu0 0.0
  %304 = vmatprep.mubr.f32.mxu0 0.0
  %305 = vmatmul.mubr.f32.gmra.mrb[0].mxu0 %v214
  %v306 = vpop.f32.mrb[0].mxu0
  %v307 = vadd.f32 %v238, %v306
  %v308 = vpop.f32.mrb[0].mxu0
  %309 = vdwg.mxu0
  %v310 = vxor.u32 %v307, 2147483648
  %v311 = vmul.f32 %v310, 1.442695
  %v312 = vpow.pop %v311
  %v313 = vadd.f32 %v312, 1.0
  %v314 = vrcp.pop %v313
  %v315 = vmul.f32 1.0, %v314
  %s316 = scalar_lea.vmem %s1, 384
  %v317 = vld [vmem:[%s316] sm:$0xff]
  %v318 = vld [vmem:[%s316 + $0x8] sm:$0xff]
  %v319 = vld [vmem:[%s316 + $0x10] sm:$0xff]
  %v320 = vld [vmem:[%s316 + $0x18] sm:$0xff]
  %v321 = vld [vmem:[%s316 + $0x20] sm:$0xff]
  %v322 = vld [vmem:[%s316 + $0x28] sm:$0xff]
  %v323 = vld [vmem:[%s316 + $0x30] sm:$0xff]
  %v324 = vld [vmem:[%s316 + $0x38] sm:$0xff]
  %v325 = vld [vmem:[%s316 + $0x40] sm:$0xff]
  %v326 = vld [vmem:[%s316 + $0x48] sm:$0xff]
  %v327 = vld [vmem:[%s316 + $0x50] sm:$0xff]
  %v328 = vld [vmem:[%s316 + $0x58] sm:$0xff]
  %v329 = vld [vmem:[%s316 + $0x60] sm:$0xff]
  %v330 = vld [vmem:[%s316 + $0x68] sm:$0xff]
  %v331 = vld [vmem:[%s316 + $0x70] sm:$0xff]
  %v332 = vld [vmem:[%s316 + $0x78] sm:$0xff]
  %s333 = scalar_lea.vmem %s2, 3
  %v334 = vld [vmem:[%s333] sm:$0x1]
  %v336 = vlaneseq
  %v337 = vshrl.u32 %v336, 7
  %v338 = vsub.s32 0, %v337
  %v339 = vrot.slane %v334, %v338
  %341 = vmatprep.subr.mxu0 0.0
  %342 = vmatpush1.msra.mxu0 %v317
  %343 = vmatprep.subr.mxu0 0.0
  %344 = vmatpush1.msra.mxu0 %v318
  %345 = vmatprep.subr.mxu0 0.0
  %346 = vmatpush1.msra.mxu0 %v319
  %347 = vmatprep.subr.mxu0 0.0
  %348 = vmatpush1.msra.mxu0 %v320
  %349 = vmatprep.subr.mxu0 0.0
  %350 = vmatpush1.msra.mxu0 %v321
  %351 = vmatprep.subr.mxu0 0.0
  %352 = vmatpush1.msra.mxu0 %v322
  %353 = vmatprep.subr.mxu0 0.0
  %354 = vmatpush1.msra.mxu0 %v323
  %355 = vmatprep.subr.mxu0 0.0
  %356 = vmatpush1.msra.mxu0 %v324
  %357 = vmatprep.subr.mxu0 0.0
  %358 = vmatpush1.msra.mxu0 %v325
  %359 = vmatprep.subr.mxu0 0.0
  %360 = vmatpush1.msra.mxu0 %v326
  %361 = vmatprep.subr.mxu0 0.0
  %362 = vmatpush1.msra.mxu0 %v327
  %363 = vmatprep.subr.mxu0 0.0
  %364 = vmatpush1.msra.mxu0 %v328
  %365 = vmatprep.subr.mxu0 0.0
  %366 = vmatpush1.msra.mxu0 %v329
  %367 = vmatprep.subr.mxu0 0.0
  %368 = vmatpush1.msra.mxu0 %v330
  %369 = vmatprep.subr.mxu0 0.0
  %370 = vmatpush1.msra.mxu0 %v331
  %371 = vmatprep.subr.mxu0 0.0
  %372 = vmatpush1.msra.mxu0 %v332
  %373 = vmatprep.subr.mxu0 0.0
  %374 = vmatpush1.msra.mxu0 0.0
  %375 = vmatprep.subr.mxu0 0.0
  %376 = vmatpush1.msra.mxu0 0.0
  %377 = vmatprep.subr.mxu0 0.0
  %378 = vmatpush1.msra.mxu0 0.0
  %379 = vmatprep.subr.mxu0 0.0
  %380 = vmatpush1.msra.mxu0 0.0
  %381 = vmatprep.subr.mxu0 0.0
  %382 = vmatpush1.msra.mxu0 0.0
  %383 = vmatprep.subr.mxu0 0.0
  %384 = vmatpush1.msra.mxu0 0.0
  %385 = vmatprep.subr.mxu0 0.0
  %386 = vmatpush1.msra.mxu0 0.0
  %387 = vmatprep.subr.mxu0 0.0
  %388 = vmatpush1.msra.mxu0 0.0
  %389 = vmatprep.subr.mxu0 0.0
  %390 = vmatpush1.msra.mxu0 0.0
  %391 = vmatprep.subr.mxu0 0.0
  %392 = vmatpush1.msra.mxu0 0.0
  %393 = vmatprep.subr.mxu0 0.0
  %394 = vmatpush1.msra.mxu0 0.0
  %395 = vmatprep.subr.mxu0 0.0
  %396 = vmatpush1.msra.mxu0 0.0
  %397 = vmatprep.subr.mxu0 0.0
  %398 = vmatpush1.msra.mxu0 0.0
  %399 = vmatprep.subr.mxu0 0.0
  %400 = vmatpush1.msra.mxu0 0.0
  %401 = vmatprep.subr.mxu0 0.0
  %402 = vmatpush1.msra.mxu0 0.0
  %403 = vmatprep.subr.mxu0 0.0
  %404 = vmatpush1.msra.mxu0 0.0
  %405 = vmatprep.mubr.f32.mxu0 0.0
  %406 = vmatmul.mubr.f32.gmra.mrb[0].mxu0 %v315
  %v407 = vpop.f32.mrb[0].mxu0
  %v408 = vadd.f32 %v339, %v407
  %v409 = vpop.f32.mrb[0].mxu0
  %410 = vdwg.mxu0
  %v411 = vxor.u32 %v408, 2147483648
  %v412 = vmul.f32 %v411, 1.442695
  %v413 = vpow.pop %v412
  %v414 = vadd.f32 %v413, 1.0
  %v415 = vrcp.pop %v414
  %v416 = vmul.f32 1.0, %v415
  %417 = vst [vmem:[%s3] sm:$0xff] %v416
  // Predicated region
  $region14: #{nu2_forward.1} parent=0 // pred_check
    _
  $region15: #{nu2_forward.1} parent=0 // pred_check_branch
    %419 = sbr.rel (0) target = $region17
  $region16: #{nu2_forward.1} parent=0 // pred_region
    _
  $region17: #{nu2_forward.1} parent=0 // pred_fallthru
    _
  // Predicated region
  $region18: #{nu2_forward.1} parent=0 // pred_check
    _
  $region19: #{nu2_forward.1} parent=0 // pred_check_branch
    %421 = sbr.rel (0) target = $region21
  $region20: #{nu2_forward.1} parent=0 // pred_region
    _
  $region21: #{nu2_forward.1} parent=0 // pred_fallthru
    _

</llo_original>
